<compile_context>
chip_gen: v7x
topology: tpu7x:2x2x1
jax: 0.10.0
libtpu: 0.0.40
codegen_flags: <defaults>
</compile_context>

<pallas_src>
import jax
import jax.numpy as jnp
import numpy as np
from jax.experimental import pallas as pl
from jax.experimental.pallas import tpu as pltpu


def conv1x1_bias_relu_kernel(x_ref, w_ref, b_ref, o_ref):
    # x_ref: (1, Cin, tm)   w_ref: (Cout, Cin)   b_ref: (Cout, 1)
    # o_ref: (1, Cout, tm)
    cout, cin = w_ref.shape
    tm = x_ref.shape[-1]
    x = x_ref[0]                                          # (Cin, tm)
    acc = jnp.broadcast_to(b_ref[...], (cout, tm))        # bias, hoisted once
    for c in range(cin):                                  # Cin is tiny & static
        acc = acc + w_ref[:, c:c + 1] * x[c:c + 1, :]     # VPU FMA, lane-dense
    o_ref[0] = jnp.maximum(acc, 0.0).astype(o_ref.dtype)


def conv1x1_bias_relu(x3d, w2d, b2d, *, tm=512):
    """relu(W @ X + b) per batch.  x3d: (N, Cin, M) -> (N, Cout, M)."""
    N, Cin, M = x3d.shape
    Cout = w2d.shape[0]
    if M <= tm:
        tm = M                      # single full-extent block (always legal)
    else:
        assert tm % 128 == 0        # lane-dense tiles
    grid_m = pl.cdiv(M, tm)
    return pl.pallas_call(
        conv1x1_bias_relu_kernel,
        out_shape=jax.ShapeDtypeStruct((N, Cout, M), jnp.float32),
        grid_spec=pltpu.PrefetchScalarGridSpec(
            num_scalar_prefetch=0,
            grid=(N, grid_m),
            in_specs=[
                pl.BlockSpec((1, Cin, tm), lambda n, m: (n, 0, m)),
                pl.BlockSpec((Cout, Cin), lambda n, m: (0, 0)),   # resident
                pl.BlockSpec((Cout, 1), lambda n, m: (0, 0)),     # resident
            ],
            out_specs=pl.BlockSpec((1, Cout, tm), lambda n, m: (n, 0, m)),
        ),
        compiler_params=pltpu.CompilerParams(
            dimension_semantics=("parallel", "parallel"),
            vmem_limit_bytes=32 * 1024 * 1024,
        ),
    )(x3d, w2d, b2d)


def upsample_block(x, weight, bias, scale, *, tm=512):
    """x: (N, Cin, D, H, W) float32 NCDHW.  weight: (Cout, Cin, 1, 1, 1)."""
    N, Cin, D, H, W = x.shape
    Cout = weight.shape[0]
    r = scale
    assert Cout == Cin * r ** 2 and Cout % (r ** 3) == 0
    n_out = Cout // r ** 3
    Dp, Hp, Wp = D + 2, H + 2, W + 2
    Mp = Dp * Hp * Wp

    # Conv3d(k=1, padding=1): zero-pad the (small) input once; the border of
    # the conv output then falls out of the same kernel as relu(bias).
    xp = jnp.pad(x, ((0, 0), (0, 0), (1, 1), (1, 1), (1, 1))).reshape(N, Cin, Mp)

    y = conv1x1_bias_relu(xp, weight.reshape(Cout, Cin),
                          bias.reshape(Cout, 1), tm=tm)

    # PixelShuffle3d (ReLU already applied in-kernel; it commutes with the
    # shuffle).  Reshape is free; the transpose is one fused XLA pass.
    y = y.reshape(N, n_out, r, r, r, Dp, Hp, Wp)
    y = y.transpose(0, 1, 5, 2, 6, 3, 7, 4)
    return y.reshape(N, n_out, Dp * r, Hp * r, Wp * r)


def pixel_shuffle_3d(x, r):
    # canonical PixelShuffle3d: (N, C*r^3, D, H, W) -> (N, C, D*r, H*r, W*r)
    N, C, D, H, W = x.shape
    n_out = C // (r ** 3)
    x = x.reshape(N, n_out, r, r, r, D, H, W)
    x = x.transpose(0, 1, 5, 2, 6, 3, 7, 4)
    return x.reshape(N, n_out, D * r, H * r, W * r)


def upsample_block_ref(x, weight, bias, scale):
    """Pure-JAX reference (matches PyTorch semantics)."""
    N, Cin, D, H, W = x.shape
    Cout = weight.shape[0]
    xpad = jnp.pad(x, ((0, 0), (0, 0), (1, 1), (1, 1), (1, 1)))
    conv = jnp.einsum("ncdhw,oc->nodhw", xpad, weight.reshape(Cout, Cin))
    conv = conv + bias[None, :, None, None, None]
    return jnp.maximum(pixel_shuffle_3d(conv, scale), 0.0)


if __name__ == "__main__":
    # Small shapes consistent with the module: in_c=4, scale_factor=2.
    N, in_c, D, H, W = 2, 4, 8, 8, 8
    scale = 2
    out_c = in_c * scale ** 2  # 16

    key = jax.random.PRNGKey(0)
    kx, kw, kb = jax.random.split(key, 3)
    x = jax.random.normal(kx, (N, in_c, D, H, W), dtype=jnp.float32)
    weight = 0.1 * jax.random.normal(kw, (out_c, in_c, 1, 1, 1), dtype=jnp.float32)
    bias = 0.1 * jax.random.normal(kb, (out_c,), dtype=jnp.float32)

    fwd = jax.jit(lambda x_, w_, b_: upsample_block(x_, w_, b_, scale))
    out = jax.block_until_ready(fwd(x, weight, bias))

    ref = upsample_block_ref(x, weight, bias, scale)
    np.testing.assert_allclose(np.asarray(out), np.asarray(ref),
                               rtol=1e-5, atol=1e-5)
    assert out.shape == (N, out_c // scale ** 3,
                         (D + 2) * scale, (H + 2) * scale, (W + 2) * scale)
    print("KERNEL_OK")
</pallas_src>

<mosaic_0001>
module attributes {stable_mosaic.version = 11 : i64} {
  func.func @conv1x1_bias_relu_kernel(%arg0: i32, %arg1: i32, %arg2: memref<1x4x512xf32, #tpu.memory_space<vmem>>, %arg3: memref<16x4xf32, #tpu.memory_space<vmem>>, %arg4: memref<16x1xf32, #tpu.memory_space<vmem>>, %arg5: memref<1x16x512xf32, #tpu.memory_space<vmem>>) attributes {dimension_semantics = [#tpu.dimension_semantics<parallel>, #tpu.dimension_semantics<parallel>], iteration_bounds = array<i64: 2, 2>, scalar_prefetch = 0 : i64, scratch_operands = 0 : i64, tpu.core_type = #tpu.core_type<tc>, window_params = [{transform_indices = @transform_0, window_bounds = array<i64: 1, 4, 512>}, {pipeline_mode = #tpu.pipeline_mode<synchronous>, transform_indices = @transform_1, window_bounds = array<i64: 16, 4>}, {pipeline_mode = #tpu.pipeline_mode<synchronous>, transform_indices = @transform_2, window_bounds = array<i64: 16, 1>}, {transform_indices = @transform_3, window_bounds = array<i64: 1, 16, 512>}]} {
    %c0 = arith.constant 0 : index
    %c0_0 = arith.constant 0 : index
    %c0_1 = arith.constant 0 : index
    %0 = vector.load %arg2[%c0, %c0_0, %c0_1] : memref<1x4x512xf32, #tpu.memory_space<vmem>>, vector<1x4x512xf32>
    %1 = vector.shape_cast %0 : vector<1x4x512xf32> to vector<4x512xf32>
    %c0_2 = arith.constant 0 : index
    %c0_3 = arith.constant 0 : index
    %2 = vector.load %arg4[%c0_2, %c0_3] : memref<16x1xf32, #tpu.memory_space<vmem>>, vector<16x1xf32>
    %3 = vector.shape_cast %2 : vector<16x1xf32> to vector<16x1xf32>
    %4 = vector.broadcast %3 : vector<16x1xf32> to vector<16x512xf32>
    %c0_4 = arith.constant 0 : index
    %c0_5 = arith.constant 0 : index
    %5 = vector.load %arg3[%c0_4, %c0_5] : memref<16x4xf32, #tpu.memory_space<vmem>>, vector<16x1xf32>
    %6 = vector.extract_strided_slice %1 {offsets = [0, 0], sizes = [1, 512], strides = [1, 1]} : vector<4x512xf32> to vector<1x512xf32>
    %7 = vector.broadcast %5 : vector<16x1xf32> to vector<16x512xf32>
    %8 = vector.broadcast %6 : vector<1x512xf32> to vector<16x512xf32>
    %9 = arith.mulf %7, %8 : vector<16x512xf32>
    %10 = arith.addf %4, %9 : vector<16x512xf32>
    %c0_6 = arith.constant 0 : index
    %c1 = arith.constant 1 : index
    %11 = vector.load %arg3[%c0_6, %c1] : memref<16x4xf32, #tpu.memory_space<vmem>>, vector<16x1xf32>
    %12 = vector.extract_strided_slice %1 {offsets = [1, 0], sizes = [1, 512], strides = [1, 1]} : vector<4x512xf32> to vector<1x512xf32>
    %13 = vector.broadcast %11 : vector<16x1xf32> to vector<16x512xf32>
    %14 = vector.broadcast %12 : vector<1x512xf32> to vector<16x512xf32>
    %15 = arith.mulf %13, %14 : vector<16x512xf32>
    %16 = arith.addf %10, %15 : vector<16x512xf32>
    %c0_7 = arith.constant 0 : index
    %c2 = arith.constant 2 : index
    %17 = vector.load %arg3[%c0_7, %c2] : memref<16x4xf32, #tpu.memory_space<vmem>>, vector<16x1xf32>
    %18 = vector.extract_strided_slice %1 {offsets = [2, 0], sizes = [1, 512], strides = [1, 1]} : vector<4x512xf32> to vector<1x512xf32>
    %19 = vector.broadcast %17 : vector<16x1xf32> to vector<16x512xf32>
    %20 = vector.broadcast %18 : vector<1x512xf32> to vector<16x512xf32>
    %21 = arith.mulf %19, %20 : vector<16x512xf32>
    %22 = arith.addf %16, %21 : vector<16x512xf32>
    %c0_8 = arith.constant 0 : index
    %c3 = arith.constant 3 : index
    %23 = vector.load %arg3[%c0_8, %c3] : memref<16x4xf32, #tpu.memory_space<vmem>>, vector<16x1xf32>
    %24 = vector.extract_strided_slice %1 {offsets = [3, 0], sizes = [1, 512], strides = [1, 1]} : vector<4x512xf32> to vector<1x512xf32>
    %25 = vector.broadcast %23 : vector<16x1xf32> to vector<16x512xf32>
    %26 = vector.broadcast %24 : vector<1x512xf32> to vector<16x512xf32>
    %27 = arith.mulf %25, %26 : vector<16x512xf32>
    %28 = arith.addf %22, %27 : vector<16x512xf32>
    %cst = arith.constant 0.000000e+00 : f32
    %29 = vector.broadcast %cst : f32 to vector<16x512xf32>
    %30 = arith.maximumf %28, %29 : vector<16x512xf32>
    %c0_9 = arith.constant 0 : index
    %c0_10 = arith.constant 0 : index
    %c0_11 = arith.constant 0 : index
    %31 = vector.load %arg5[%c0_9, %c0_10, %c0_11] : memref<1x16x512xf32, #tpu.memory_space<vmem>>, vector<1x16x512xf32>
    %32 = vector.shape_cast %31 : vector<1x16x512xf32> to vector<16x512xf32>
    %33 = vector.shape_cast %30 : vector<16x512xf32> to vector<1x16x512xf32>
    tpu.vector_store %arg5[%c0_9, %c0_10, %c0_11], %33 {strides = array<i32>} : memref<1x16x512xf32, #tpu.memory_space<vmem>>, vector<1x16x512xf32>,
    return
  }
  func.func @transform_0(%arg0: i32, %arg1: i32) -> (i32, i32, i32) {
    %c0_i32 = arith.constant 0 : i32
    %c0_i32_0 = arith.constant 0 : i32
    return %arg0, %c0_i32, %arg1 : i32, i32, i32
  }
  func.func @transform_1(%arg0: i32, %arg1: i32) -> (i32, i32) {
    %c0_i32 = arith.constant 0 : i32
    %c0_i32_0 = arith.constant 0 : i32
    %c0_i32_1 = arith.constant 0 : i32
    return %c0_i32, %c0_i32_0 : i32, i32
  }
  func.func @transform_2(%arg0: i32, %arg1: i32) -> (i32, i32) {
    %c0_i32 = arith.constant 0 : i32
    %c0_i32_0 = arith.constant 0 : i32
    %c0_i32_1 = arith.constant 0 : i32
    return %c0_i32, %c0_i32_0 : i32, i32
  }
  func.func @transform_3(%arg0: i32, %arg1: i32) -> (i32, i32, i32) {
    %c0_i32 = arith.constant 0 : i32
    %c0_i32_0 = arith.constant 0 : i32
    return %arg0, %c0_i32, %arg1 : i32, i32, i32
  }
}

</mosaic_0001>

<llo_original>
// kernel: _lambda_.1
$region0: #{_lambda_.1}
  #allocation0 [shape = 'u32[]', space=smem, size = 0x4, offset = 0x4, fixed_abs, tag = 'smem constant byte address 0x4 - core index']
  #allocation1 [shape = 'u32[144,128]{1,0:T(1,128)}', space=vmem, size = 0x12000, scoped, tag = 'internal scratch']
  %s0 = inlined_call_operand.vmem [shape: f32[2,4,1000], index: 0, kind: input, shape index: {}]
  %s1 = inlined_call_operand.vmem [shape: f32[16,4], index: 1, kind: input, shape index: {}]
  %s2 = inlined_call_operand.vmem [shape: f32[16,1], index: 2, kind: input, shape index: {}]
  %s3 = inlined_call_operand.vmem [shape: f32[2,16,1000], index: 3, kind: output, shape index: {}]
  %s4 = sld [smem:[#allocation0]]
  $region64: #{_lambda_.1} parent=0
    _
  %s6 = ssub.s32 1, %s4
  %s7 = scalar_select 0, %s6, %s4
  $region1: #{_lambda_.1} parent=0
    #allocation2 [shape = 'u8[65536]{0}', space=vmem, size = 0x10000, scoped, tag = 'output window, operand 0']
    loop: start=0, step=1, limit=6
    $region2: #{_lambda_.1} parent=1 // loop_pre_header
      _
    $region3: #{_lambda_.1} parent=1 // loop_header
      %s9 = sphi 0, %s13
      %p10 = scmp.ge.s32.totalorder %s9, 6
      %s16 = sphi 0, %s28
      %s17 = sphi 0, %s24
      %s18 = sphi 0, %s16
      %s19 = sphi 0, %s17
      %s20 = sphi 0, %s18
      %s21 = sphi 0, %s19
      %s33 = sphi 0, %s35
      %s36 = sphi 0, %s33
      %s37 = sphi 0, %s36
      %s53 = sphi 0, %s37
      %s57 = sphi 0, %s57
      %s59 = sphi 0, %s57
      %s60 = sphi 0, %s59
      %s74 = sphi 0, %s60
      %s78 = sphi 0, %s78
      %s80 = sphi 0, %s78
      %s81 = sphi 0, %s80
      %s95 = sphi 0, %s81
      %s103 = sphi 0, %s105
      %s106 = sphi 0, %s103
      %s107 = sphi 0, %s106
      %s123 = sphi 0, %s107
    $region4: #{_lambda_.1} parent=1 // loop_header_branch
      %12 = sbr.rel (%p10) target = $region8
    $region5: #{_lambda_.1} parent=1 // loop_body
      %s14 = ssub.s32 %s9, 1
      %s15 = ssub.s32 %s9, 2
      %s22 = sadd.s32 1, %s17
      %p23 = scmp.ge.s32.totalorder %s22, 2
      %s24 = scalar_select %p23, 0, %s22
      %s25 = sadd.s32 1, %s16
      %s26 = scalar_select %p23, %s25, %s16
      %p27 = scmp.ge.s32.totalorder %s26, 2
      %s28 = scalar_select %p27, 0, %s26
      %s29 = ssub.s32 %s16, %s28
      %s30 = ssub.s32 %s17, %s24
      %s31 = sor.u32 %s29, %s30
      %p32 = scmp.eq.s32.totalorder %s31, 0
      %s34 = sadd.s32 %s33, 1
      %s35 = scalar_select %p32, %s33, %s34
      %p38 = pneg %p32
      %p39 = scmp.eq.s32.totalorder %s9, 3
      %p40 = por %p38, %p39
      %p41 = scmp.ne.s32.totalorder %s33, %s36
      %p42 = scmp.eq.s32.totalorder %s9, 0
      %p43 = por %p41, %p42
      %p44 = scmp.ne.s32.totalorder %s33, %s36
      %p45 = scmp.eq.s32.totalorder %s14, 3
      %p46 = por %p44, %p45
      %p47 = scmp.ne.s32.totalorder %s36, %s37
      %p48 = scmp.eq.s32.totalorder %s14, 0
      %p49 = por %p47, %p48
      %p50 = scmp.ne.s32.totalorder %s36, %s37
      %p51 = scmp.eq.s32.totalorder %s15, 3
      %p52 = por %p50, %p51
      %p54 = scmp.ne.s32.totalorder %s37, %s53
      %p55 = scmp.eq.s32.totalorder %s15, 0
      %p56 = por %p54, %p55
      %s58 = sadd.s32 %s57, 1
      %p61 = scmp.eq.s32.totalorder %s9, 3
      %p62 = scmp.ne.s32.totalorder %s57, %s59
      %p63 = scmp.eq.s32.totalorder %s9, 0
      %p64 = por %p62, %p63
      %p65 = scmp.ne.s32.totalorder %s57, %s59
      %p66 = scmp.eq.s32.totalorder %s14, 3
      %p67 = por %p65, %p66
      %p68 = scmp.ne.s32.totalorder %s59, %s60
      %p69 = scmp.eq.s32.totalorder %s14, 0
      %p70 = por %p68, %p69
      %p71 = scmp.ne.s32.totalorder %s59, %s60
      %p72 = scmp.eq.s32.totalorder %s15, 3
      %p73 = por %p71, %p72
      %p75 = scmp.ne.s32.totalorder %s60, %s74
      %p76 = scmp.eq.s32.totalorder %s15, 0
      %p77 = por %p75, %p76
      %s79 = sadd.s32 %s78, 1
      %p82 = scmp.eq.s32.totalorder %s9, 3
      %p83 = scmp.ne.s32.totalorder %s78, %s80
      %p84 = scmp.eq.s32.totalorder %s9, 0
      %p85 = por %p83, %p84
      %p86 = scmp.ne.s32.totalorder %s78, %s80
      %p87 = scmp.eq.s32.totalorder %s14, 3
      %p88 = por %p86, %p87
      %p89 = scmp.ne.s32.totalorder %s80, %s81
      %p90 = scmp.eq.s32.totalorder %s14, 0
      %p91 = por %p89, %p90
      %p92 = scmp.ne.s32.totalorder %s80, %s81
      %p93 = scmp.eq.s32.totalorder %s15, 3
      %p94 = por %p92, %p93
      %p96 = scmp.ne.s32.totalorder %s81, %s95
      %p97 = scmp.eq.s32.totalorder %s15, 0
      %p98 = por %p96, %p97
      %s99 = ssub.s32 %s16, %s28
      %s100 = ssub.s32 %s17, %s24
      %s101 = sor.u32 %s99, %s100
      %p102 = scmp.eq.s32.totalorder %s101, 0
      %s104 = sadd.s32 %s103, 1
      %s105 = scalar_select %p102, %s103, %s104
      %p108 = pneg %p102
      %p109 = scmp.eq.s32.totalorder %s9, 3
      %p110 = por %p108, %p109
      %p111 = scmp.ne.s32.totalorder %s103, %s106
      %p112 = scmp.eq.s32.totalorder %s9, 0
      %p113 = por %p111, %p112
      %p114 = scmp.ne.s32.totalorder %s103, %s106
      %p115 = scmp.eq.s32.totalorder %s14, 3
      %p116 = por %p114, %p115
      %p117 = scmp.ne.s32.totalorder %s106, %s107
      %p118 = scmp.eq.s32.totalorder %s14, 0
      %p119 = por %p117, %p118
      %p120 = scmp.ne.s32.totalorder %s106, %s107
      %p121 = scmp.eq.s32.totalorder %s15, 3
      %p122 = por %p120, %p121
      %p124 = scmp.ne.s32.totalorder %s107, %s123
      %p125 = scmp.eq.s32.totalorder %s15, 0
      %p126 = por %p124, %p125
      %p127 = scmp.le.s32.totalorder 1, %s9
      %p128 = scmp.lt.s32.totalorder %s9, 5
      %p129 = pnand %p127, %p128
      %p130 = pneg %p129
      // Predicated region
      $region9: #{_lambda_.1} parent=5 // pred_check
        _
      $region10: #{_lambda_.1} parent=5 // pred_check_branch
        %132 = sbr.rel (%p129) target = $region12
      $region11: #{_lambda_.1} parent=5 // pred_region
        %s133 = ssub.s32 %s9, 1
        // Predicated region
        $region13: #{_lambda_.1} parent=11 // pred_check
          %p134 = pneg %p70
        $region14: #{_lambda_.1} parent=11 // pred_check_branch
          %136 = sbr.rel (%p134) target = $region16
        $region15: #{_lambda_.1} parent=11 // pred_region
          _
        $region16: #{_lambda_.1} parent=11 // pred_fallthru
          _
        // Predicated region
        $region17: #{_lambda_.1} parent=11 // pred_check
          %p137 = pneg %p91
        $region18: #{_lambda_.1} parent=11 // pred_check_branch
          %139 = sbr.rel (%p137) target = $region20
        $region19: #{_lambda_.1} parent=11 // pred_region
          _
        $region20: #{_lambda_.1} parent=11 // pred_fallthru
          _
      $region12: #{_lambda_.1} parent=5 // pred_fallthru
        _
      %p140 = scmp.lt.s32.totalorder %s9, 4
      // Predicated region
      $region21: #{_lambda_.1} parent=5 // pred_check
        %p141 = pneg %p140
      $region22: #{_lambda_.1} parent=5 // pred_check_branch
        %143 = sbr.rel (%p141) target = $region24
      $region23: #{_lambda_.1} parent=5 // pred_region
        // Predicated region
        $region25: #{_lambda_.1} parent=23 // pred_check
          %p144 = pneg %p43
        $region26: #{_lambda_.1} parent=23 // pred_check_branch
          %146 = sbr.rel (%p144) target = $region28
        $region27: #{_lambda_.1} parent=23 // pred_region
          %s147 = smul.u32 4, %s17
          %p148 = scmp.lt.s32.totalorder %s16, 1
          %s149 = scalar_select %p148, %s16, 1
          %p150 = scmp.lt.s32.totalorder %s147, 7
          %s151 = scalar_select %p150, %s147, 7
          %s152 = smul.addr %s149, 8
          %s153 = sadd.s32 %s151, %s152
          %s154 = smul.addr %s153, 4
          %s155 = scalar_lea.vmem %s0, %s154
          %s156 = smul.u32 4, %s17
        $region28: #{_lambda_.1} parent=23 // pred_fallthru
          _
      $region24: #{_lambda_.1} parent=5 // pred_fallthru
        _
      %p157 = scmp.le.s32.totalorder 1, %s9
      %p158 = scmp.lt.s32.totalorder %s9, 5
      %p159 = pnand %p157, %p158
      %p160 = pneg %p159
      // Predicated region
      $region29: #{_lambda_.1} parent=5 // pred_check
        _
      $region30: #{_lambda_.1} parent=5 // pred_check_branch
        %162 = sbr.rel (%p159) target = $region32
      $region31: #{_lambda_.1} parent=5 // pred_region
        %s163 = ssub.s32 %s9, 1
        %s164 = smul.u32 4, %s19
        %p165 = scmp.lt.s32.totalorder %s18, 1
        %s166 = scalar_select %p165, %s18, 1
        %p167 = scmp.lt.s32.totalorder %s164, 7
        %s168 = scalar_select %p167, %s164, 7
        %s169 = smul.addr %s166, 8
        %s170 = sadd.s32 %s168, %s169
        %s171 = smul.addr %s170, 4
        %s172 = scalar_lea.vmem %s0, %s171
        %p173 = pneg %p49
        %p174 = pneg %p46
        %p175 = pneg %p70
        %p176 = pneg %p67
        %p177 = pneg %p91
        %p178 = pneg %p88
        %p179 = pneg %p119
        %p180 = pneg %p116
        %s181 = sand.u32 %s106, 1
        %s182 = sand.u32 %s106, 1
        %s183 = smul.addr %s182, 64
        %s184 = scalar_lea.vmem [#allocation2], %s183
        %s185 = smul.u32 4, %s19
        %p186 = scmp.lt.s32.totalorder %s18, 1
        %s187 = scalar_select %p186, %s18, 1
        %p188 = scmp.lt.s32.totalorder %s185, 7
        %s189 = scalar_select %p188, %s185, 7
        %s190 = smul.addr %s187, 8
        %s191 = sadd.s32 %s189, %s190
        %s192 = smul.addr %s191, 4
        %s193 = scalar_lea.vmem %s0, %s192
        %s194 = smul.u32 4, %s19
        %s195 = smul.u32 4, %s19
        %v196 = vld [vmem:[%s193] sm:$0xff]
        %v197 = vld [vmem:[%s193 + $0x8] sm:$0xff]
        %v198 = vld [vmem:[%s2] sm:$0xff]
        %v199 = vld [vmem:[%s2 + $0x8] sm:$0xff]
        %201 = vset.pattern.permute.xlu0 0
        %202 = vperm.xlu0 %201, %v198
        %v203 = vpop.permute.xlu0 %202
        %206 = vset.pattern.permute.xlu0 0
        %207 = vperm.xlu0 %206, %v199
        %v208 = vpop.permute.xlu0 %207
        %v210 = vld [vmem:[%s1] sm:$0xff]
        %v211 = vld [vmem:[%s1 + $0x8] sm:$0xff]
        %213 = vset.pattern.permute.xlu0 0
        %214 = vperm.xlu0 %213, %v210
        %v215 = vpop.permute.xlu0 %214
        %218 = vset.pattern.permute.xlu0 0
        %219 = vperm.xlu0 %218, %v211
        %v220 = vpop.permute.xlu0 %219
        %v224 = vlaneseq
        %v225 = vshrl.u32 %v224, 7
        %v226 = vsub.s32 0, %v225
        %v227 = vrot.slane %v196, %v226
        %v228 = vlaneseq
        %v229 = vshrl.u32 %v228, 7
        %v230 = vsub.s32 4, %v229
        %v231 = vrot.slane %v196, %v230
        %v232 = vlaneseq
        %v233 = vshrl.u32 %v232, 7
        %v234 = vsub.s32 0, %v233
        %v235 = vrot.slane %v197, %v234
        %v236 = vlaneseq
        %v237 = vshrl.u32 %v236, 7
        %v238 = vsub.s32 4, %v237
        %v239 = vrot.slane %v197, %v238
        %v244 = vlaneseq
        %v245 = vshrl.u32 %v244, 7
        %v246 = vsub.s32 0, %v245
        %v247 = vrot.slane %v227, %v246
        %v248 = vlaneseq
        %v249 = vshrl.u32 %v248, 7
        %v250 = vsub.s32 0, %v249
        %v251 = vrot.slane %v231, %v250
        %v252 = vlaneseq
        %v253 = vshrl.u32 %v252, 7
        %v254 = vsub.s32 0, %v253
        %v255 = vrot.slane %v235, %v254
        %v256 = vlaneseq
        %v257 = vshrl.u32 %v256, 7
        %v258 = vsub.s32 0, %v257
        %v259 = vrot.slane %v239, %v258
        %v260 = vmul.f32 %v215, %v247
        %v261 = vmul.f32 %v215, %v251
        %v262 = vmul.f32 %v215, %v255
        %v263 = vmul.f32 %v215, %v259
        %v264 = vmul.f32 %v220, %v247
        %v265 = vmul.f32 %v220, %v251
        %v266 = vmul.f32 %v220, %v255
        %v267 = vmul.f32 %v220, %v259
        %v268 = vadd.f32 %v203, %v260
        %v269 = vadd.f32 %v203, %v261
        %v270 = vadd.f32 %v203, %v262
        %v271 = vadd.f32 %v203, %v263
        %v272 = vadd.f32 %v208, %v264
        %v273 = vadd.f32 %v208, %v265
        %v274 = vadd.f32 %v208, %v266
        %v275 = vadd.f32 %v208, %v267
        %276 = vset.pattern.permute.xlu0 1
        %277 = vperm.xlu0 %276, %v210
        %v278 = vpop.permute.xlu0 %277
        %280 = vset.pattern.permute.xlu0 1
        %281 = vperm.xlu0 %280, %v211
        %v282 = vpop.permute.xlu0 %281
        %v284 = vlaneseq
        %v285 = vshrl.u32 %v284, 7
        %v286 = vsub.s32 1, %v285
        %v287 = vrot.slane %v196, %v286
        %v288 = vlaneseq
        %v289 = vshrl.u32 %v288, 7
        %v290 = vsub.s32 5, %v289
        %v291 = vrot.slane %v196, %v290
        %v292 = vlaneseq
        %v293 = vshrl.u32 %v292, 7
        %v294 = vsub.s32 1, %v293
        %v295 = vrot.slane %v197, %v294
        %v296 = vlaneseq
        %v297 = vshrl.u32 %v296, 7
        %v298 = vsub.s32 5, %v297
        %v299 = vrot.slane %v197, %v298
        %v304 = vlaneseq
        %v305 = vshrl.u32 %v304, 7
        %v306 = vsub.s32 1, %v305
        %v307 = vrot.slane %v287, %v306
        %v308 = vlaneseq
        %v309 = vshrl.u32 %v308, 7
        %v310 = vsub.s32 1, %v309
        %v311 = vrot.slane %v291, %v310
        %v312 = vlaneseq
        %v313 = vshrl.u32 %v312, 7
        %v314 = vsub.s32 1, %v313
        %v315 = vrot.slane %v295, %v314
        %v316 = vlaneseq
        %v317 = vshrl.u32 %v316, 7
        %v318 = vsub.s32 1, %v317
        %v319 = vrot.slane %v299, %v318
        %v320 = vmul.f32 %v278, %v307
        %v321 = vmul.f32 %v278, %v311
        %v322 = vmul.f32 %v278, %v315
        %v323 = vmul.f32 %v278, %v319
        %v324 = vmul.f32 %v282, %v307
        %v325 = vmul.f32 %v282, %v311
        %v326 = vmul.f32 %v282, %v315
        %v327 = vmul.f32 %v282, %v319
        %v328 = vadd.f32 %v268, %v320
        %v329 = vadd.f32 %v269, %v321
        %v330 = vadd.f32 %v270, %v322
        %v331 = vadd.f32 %v271, %v323
        %v332 = vadd.f32 %v272, %v324
        %v333 = vadd.f32 %v273, %v325
        %v334 = vadd.f32 %v274, %v326
        %v335 = vadd.f32 %v275, %v327
        %336 = vset.pattern.permute.xlu0 2
        %337 = vperm.xlu0 %336, %v210
        %v338 = vpop.permute.xlu0 %337
        %340 = vset.pattern.permute.xlu0 2
        %341 = vperm.xlu0 %340, %v211
        %v342 = vpop.permute.xlu0 %341
        %v344 = vlaneseq
        %v345 = vshrl.u32 %v344, 7
        %v346 = vsub.s32 2, %v345
        %v347 = vrot.slane %v196, %v346
        %v348 = vlaneseq
        %v349 = vshrl.u32 %v348, 7
        %v350 = vsub.s32 6, %v349
        %v351 = vrot.slane %v196, %v350
        %v352 = vlaneseq
        %v353 = vshrl.u32 %v352, 7
        %v354 = vsub.s32 2, %v353
        %v355 = vrot.slane %v197, %v354
        %v356 = vlaneseq
        %v357 = vshrl.u32 %v356, 7
        %v358 = vsub.s32 6, %v357
        %v359 = vrot.slane %v197, %v358
        %v364 = vlaneseq
        %v365 = vshrl.u32 %v364, 7
        %v366 = vsub.s32 2, %v365
        %v367 = vrot.slane %v347, %v366
        %v368 = vlaneseq
        %v369 = vshrl.u32 %v368, 7
        %v370 = vsub.s32 2, %v369
        %v371 = vrot.slane %v351, %v370
        %v372 = vlaneseq
        %v373 = vshrl.u32 %v372, 7
        %v374 = vsub.s32 2, %v373
        %v375 = vrot.slane %v355, %v374
        %v376 = vlaneseq
        %v377 = vshrl.u32 %v376, 7
        %v378 = vsub.s32 2, %v377
        %v379 = vrot.slane %v359, %v378
        %v380 = vmul.f32 %v338, %v367
        %v381 = vmul.f32 %v338, %v371
        %v382 = vmul.f32 %v338, %v375
        %v383 = vmul.f32 %v338, %v379
        %v384 = vmul.f32 %v342, %v367
        %v385 = vmul.f32 %v342, %v371
        %v386 = vmul.f32 %v342, %v375
        %v387 = vmul.f32 %v342, %v379
        %v388 = vadd.f32 %v328, %v380
        %v389 = vadd.f32 %v329, %v381
        %v390 = vadd.f32 %v330, %v382
        %v391 = vadd.f32 %v331, %v383
        %v392 = vadd.f32 %v332, %v384
        %v393 = vadd.f32 %v333, %v385
        %v394 = vadd.f32 %v334, %v386
        %v395 = vadd.f32 %v335, %v387
        %396 = vset.pattern.permute.xlu0 3
        %397 = vperm.xlu0 %396, %v210
        %v398 = vpop.permute.xlu0 %397
        %400 = vset.pattern.permute.xlu0 3
        %401 = vperm.xlu0 %400, %v211
        %v402 = vpop.permute.xlu0 %401
        %v404 = vlaneseq
        %v405 = vshrl.u32 %v404, 7
        %v406 = vsub.s32 3, %v405
        %v407 = vrot.slane %v196, %v406
        %v408 = vlaneseq
        %v409 = vshrl.u32 %v408, 7
        %v410 = vsub.s32 7, %v409
        %v411 = vrot.slane %v196, %v410
        %v412 = vlaneseq
        %v413 = vshrl.u32 %v412, 7
        %v414 = vsub.s32 3, %v413
        %v415 = vrot.slane %v197, %v414
        %v416 = vlaneseq
        %v417 = vshrl.u32 %v416, 7
        %v418 = vsub.s32 7, %v417
        %v419 = vrot.slane %v197, %v418
        %v424 = vlaneseq
        %v425 = vshrl.u32 %v424, 7
        %v426 = vsub.s32 3, %v425
        %v427 = vrot.slane %v407, %v426
        %v428 = vlaneseq
        %v429 = vshrl.u32 %v428, 7
        %v430 = vsub.s32 3, %v429
        %v431 = vrot.slane %v411, %v430
        %v432 = vlaneseq
        %v433 = vshrl.u32 %v432, 7
        %v434 = vsub.s32 3, %v433
        %v435 = vrot.slane %v415, %v434
        %v436 = vlaneseq
        %v437 = vshrl.u32 %v436, 7
        %v438 = vsub.s32 3, %v437
        %v439 = vrot.slane %v419, %v438
        %v440 = vmul.f32 %v398, %v427
        %v441 = vmul.f32 %v398, %v431
        %v442 = vmul.f32 %v398, %v435
        %v443 = vmul.f32 %v398, %v439
        %v444 = vmul.f32 %v402, %v427
        %v445 = vmul.f32 %v402, %v431
        %v446 = vmul.f32 %v402, %v435
        %v447 = vmul.f32 %v402, %v439
        %v448 = vadd.f32 %v388, %v440
        %v449 = vadd.f32 %v389, %v441
        %v450 = vadd.f32 %v390, %v442
        %v451 = vadd.f32 %v391, %v443
        %v452 = vadd.f32 %v392, %v444
        %v453 = vadd.f32 %v393, %v445
        %v454 = vadd.f32 %v394, %v446
        %v455 = vadd.f32 %v395, %v447
        %v456 = vmax.f32 %v448, 0.0
        %v457 = vmax.f32 %v449, 0.0
        %v458 = vmax.f32 %v450, 0.0
        %v459 = vmax.f32 %v451, 0.0
        %v460 = vmax.f32 %v452, 0.0
        %v461 = vmax.f32 %v453, 0.0
        %v462 = vmax.f32 %v454, 0.0
        %v463 = vmax.f32 %v455, 0.0
        %464 = vst [vmem:[%s184] sm:$0xff] %v456
        %465 = vst [vmem:[%s184 + $0x8] sm:$0xff] %v457
        %466 = vst [vmem:[%s184 + $0x10] sm:$0xff] %v458
        %467 = vst [vmem:[%s184 + $0x18] sm:$0xff] %v459
        %468 = vst [vmem:[%s184 + $0x20] sm:$0xff] %v460
        %469 = vst [vmem:[%s184 + $0x28] sm:$0xff] %v461
        %470 = vst [vmem:[%s184 + $0x30] sm:$0xff] %v462
        %471 = vst [vmem:[%s184 + $0x38] sm:$0xff] %v463
        %s472 = sand.u32 %s106, 1
        %s473 = sand.u32 %s106, 1
        %s474 = smul.addr %s473, 64
        %s475 = scalar_lea.vmem [#allocation2], %s474
        // Predicated region
        $region33: #{_lambda_.1} parent=31 // pred_check
          %p476 = pneg %p116
        $region34: #{_lambda_.1} parent=31 // pred_check_branch
          %478 = sbr.rel (%p476) target = $region36
        $region35: #{_lambda_.1} parent=31 // pred_region
          %s479 = smul.u32 4, %s19
          %s480 = smul.addr %s18, 16
          %s481 = sadd.s32 %s479, %s480
          %s482 = smul.addr %s481, 8
          %s483 = scalar_lea.vmem %s3, %s482
          // Predicated region
          $region37: #{_lambda_.1} parent=35 // pred_check
            _
          $region38: #{_lambda_.1} parent=35 // pred_check_branch
            %485 = sbr.rel (0) target = $region40
          $region39: #{_lambda_.1} parent=35 // pred_region
            // Predicated region
            $region41: #{_lambda_.1} parent=39 // pred_check
              _
            $region42: #{_lambda_.1} parent=39 // pred_check_branch
              %487 = sbr.rel (0) target = $region44
            $region43: #{_lambda_.1} parent=39 // pred_region
              loop: start=0, step=1, limit=1
              $region45: #{_lambda_.1} parent=43 // loop_pre_header
                _
              $region46: #{_lambda_.1} parent=43 // loop_header
                %s489 = sphi 0, %s493
                %p490 = scmp.ge.s32.totalorder %s489, 1
                %s494 = sphi %s475, %s475
                %s495 = sphi %s483, %s483
              $region47: #{_lambda_.1} parent=43 // loop_header_branch
                %492 = sbr.rel (%p490) target = $region51
              $region48: #{_lambda_.1} parent=43 // loop_body
                %v496 = vld [vmem:[%s494] sm:$0xff]
                %497 = vst [vmem:[%s495] sm:$0xff] %v496
                %v498 = vld [vmem:[%s494 + $0x8] sm:$0xff]
                %499 = vst [vmem:[%s495 + $0x8] sm:$0xff] %v498
                %v500 = vld [vmem:[%s494 + $0x10] sm:$0xff]
                %501 = vst [vmem:[%s495 + $0x10] sm:$0xff] %v500
                %v502 = vld [vmem:[%s494 + $0x18] sm:$0xff]
                %503 = vst [vmem:[%s495 + $0x18] sm:$0xff] %v502
                %v504 = vld [vmem:[%s494 + $0x20] sm:$0xff]
                %505 = vst [vmem:[%s495 + $0x40] sm:$0xff] %v504
                %v506 = vld [vmem:[%s494 + $0x28] sm:$0xff]
                %507 = vst [vmem:[%s495 + $0x48] sm:$0xff] %v506
                %v508 = vld [vmem:[%s494 + $0x30] sm:$0xff]
                %509 = vst [vmem:[%s495 + $0x50] sm:$0xff] %v508
                %v510 = vld [vmem:[%s494 + $0x38] sm:$0xff]
                %511 = vst [vmem:[%s495 + $0x58] sm:$0xff] %v510
              $region49: #{_lambda_.1} parent=43 // loop_footer
                %s493 = sadd.s32 1, %s489
              $region50: #{_lambda_.1} parent=43 // loop_footer_branch
                %488 = sbr.rel target = $region46
              $region51: #{_lambda_.1} parent=43 // loop_exit
                _
            $region44: #{_lambda_.1} parent=39 // pred_fallthru
              _
            // Predicated region
            $region52: #{_lambda_.1} parent=39 // pred_check
              _
            $region53: #{_lambda_.1} parent=39 // pred_check_branch
              %513 = sbr.rel target = $region55
            $region54: #{_lambda_.1} parent=39 // pred_region
              _
            $region55: #{_lambda_.1} parent=39 // pred_fallthru
              _
          $region40: #{_lambda_.1} parent=35 // pred_fallthru
            _
          %514 = vnop
        $region36: #{_lambda_.1} parent=31 // pred_fallthru
          _
      $region32: #{_lambda_.1} parent=5 // pred_fallthru
        _
      %p515 = scmp.le.s32.totalorder 2, %s9
      // Predicated region
      $region56: #{_lambda_.1} parent=5 // pred_check
        %p516 = pneg %p515
      $region57: #{_lambda_.1} parent=5 // pred_check_branch
        %518 = sbr.rel (%p516) target = $region59
      $region58: #{_lambda_.1} parent=5 // pred_region
        %s519 = ssub.s32 %s9, 2
        // Predicated region
        $region60: #{_lambda_.1} parent=58 // pred_check
          %p520 = pneg %p122
        $region61: #{_lambda_.1} parent=58 // pred_check_branch
          %522 = sbr.rel (%p520) target = $region63
        $region62: #{_lambda_.1} parent=58 // pred_region
          %s523 = sand.u32 %s107, 1
          %s524 = sand.u32 %s107, 1
          %s525 = smul.addr %s524, 64
          %s526 = scalar_lea.vmem [#allocation2], %s525
        $region63: #{_lambda_.1} parent=58 // pred_fallthru
          _
      $region59: #{_lambda_.1} parent=5 // pred_fallthru
        _
    $region6: #{_lambda_.1} parent=1 // loop_footer
      %s13 = sadd.s32 1, %s9
    $region7: #{_lambda_.1} parent=1 // loop_footer_branch
      %8 = sbr.rel target = $region3
    $region8: #{_lambda_.1} parent=1 // loop_exit
      _

</llo_original>
